<compile_context>
chip_gen: v7x
topology: tpu7x:2x2x1
jax: 0.10.0
libtpu: 0.0.40
codegen_flags: <defaults>
</compile_context>

<pallas_src>
import functools

import jax
import jax.numpy as jnp
from jax.experimental import pallas as pl
from jax.experimental.pallas import tpu as pltpu

_LANE = 128


# ----------------------------- Pallas kernel --------------------------------
def _partial_conv_kernel(xm_ref, scale_ref, w_ref, out_ref):
    """One packed-row tile of the im2col partial convolution.

    xm_ref   : (TM, G*K)   bf16  G pixels' im2col patches of (x * mask) per row
    scale_ref: (TM, G*Cp)  bf16  per-pixel 1/mask_sum (0 in holes), lane-expanded
    w_ref    : (G*K, G*Cp) bf16  block-diagonal kron(I_G, W_flat), zero-padded cols
    out_ref  : (TM, G*Cp)  bf16  normalized partial-conv output, lane-dense
    """
    acc = jnp.dot(xm_ref[...], w_ref[...], preferred_element_type=jnp.float32)
    out_ref[...] = (acc * scale_ref[...].astype(jnp.float32)).astype(out_ref.dtype)


# ------------------------------ JAX glue -------------------------------------
def _im2col(x, kh, kw, stride, padding):
    """x: (N, C, H, W) -> patches (N*Ho*Wo, C*kh*kw), plus (Ho, Wo).

    Column ordering is (C, kh, kw), matching torch Conv2d weight flattening.
    """
    n, c, h, w = x.shape
    xp = jnp.pad(x, ((0, 0), (0, 0), (padding, padding), (padding, padding)))
    ho = (h + 2 * padding - kh) // stride + 1
    wo = (w + 2 * padding - kw) // stride + 1
    cols = []
    for i in range(kh):
        for j in range(kw):
            cols.append(xp[:, :, i:i + stride * ho:stride, j:j + stride * wo:stride])
    cols = jnp.stack(cols, axis=2)                          # (N, C, kh*kw, Ho, Wo)
    cols = cols.reshape(n, c * kh * kw, ho, wo)
    cols = cols.transpose(0, 2, 3, 1).reshape(n * ho * wo, c * kh * kw)
    return cols, ho, wo


def _mask_patch_sum(mask, kh, kw, stride, padding):
    """conv(mask, all-ones weight), one (shared) output channel: (N, Ho, Wo).

    Exact sums of 0/1 floats, so `== 0` hole detection is exact.
    """
    n, _, h, w = mask.shape
    mc = jnp.sum(mask, axis=1)                              # (N, H, W)
    mcp = jnp.pad(mc, ((0, 0), (padding, padding), (padding, padding)))
    ho = (h + 2 * padding - kh) // stride + 1
    wo = (w + 2 * padding - kw) // stride + 1
    msum = jnp.zeros((n, ho, wo), jnp.float32)
    for i in range(kh):
        for j in range(kw):
            msum = msum + mcp[:, i:i + stride * ho:stride, j:j + stride * wo:stride]
    return msum


def _pack_factors(c_out):
    """(c_out_p, G): channels padded to a power-of-two divisor of 128 (or a
    multiple of 128 when c_out >= 128) and #pixels packed per lane-dense row."""
    if c_out >= _LANE:
        return pl.cdiv(c_out, _LANE) * _LANE, 1
    c_out_p = 1
    while c_out_p < c_out:
        c_out_p *= 2
    return c_out_p, _LANE // c_out_p


def _pick_tm(m_packed, packed_k):
    """Packed-row tile: ~1 MiB of bf16 patches per step, multiple of 8 sublanes,
    and >= 2-4 grid steps when there are enough rows (v7x: 2 TensorCores)."""
    tm = (1 << 20) // max(packed_k * 2, 1)
    tm = max(8, min(1024, tm // 8 * 8))
    if m_packed >= 32:
        tm = min(tm, max(8, m_packed // 4 // 8 * 8))
    elif m_packed >= 16:
        tm = min(tm, max(8, m_packed // 2 // 8 * 8))
    else:
        tm = 8
    return tm


@functools.partial(jax.jit, static_argnames=("kernel_size", "stride", "padding"))
def partial_conv(x, mask, weight, *, kernel_size, stride=1, padding=0):
    """Partial convolution forward (bias=False, dilation=1, groups=1).

    x, mask : (N, C_in, H, W) float32 (NCHW)
    weight  : (C_out, C_in, KH, KW) float32
    Returns (output, new_mask), both (N, C_out, Ho, Wo) float32.
    """
    kh = kw = kernel_size
    c_out, c_in = weight.shape[0], weight.shape[1]
    n = x.shape[0]

    x = x.astype(jnp.float32)
    mask = mask.astype(jnp.float32)

    # Single bf16 im2col stream of the masked input (mask never enters the
    # kernel as an (M, K) stream).
    xm = (x * mask).astype(jnp.bfloat16)
    xm_pat, ho, wo = _im2col(xm, kh, kw, stride, padding)    # (M, K) bf16
    msum = _mask_patch_sum(mask, kh, kw, stride, padding)    # (N, Ho, Wo) f32

    m_rows, k = xm_pat.shape
    c_out_p, g = _pack_factors(c_out)
    lane_w = g * c_out_p                                      # multiple of 128
    packed_k = g * k

    # Per-pixel normalization scale, exact in f32 (holes -> 0).
    msum_flat = msum.reshape(m_rows)
    scale = jnp.where(msum_flat > 0.0, 1.0 / jnp.maximum(msum_flat, 1.0), 0.0)

    # Pad pixel count so packed rows are a multiple of the row tile; padded
    # pixels have zero patches and zero scale -> zero output (sliced off below).
    tm = _pick_tm(pl.cdiv(m_rows, g), packed_k)
    m_packed = pl.cdiv(m_rows, g * tm) * tm
    m_pad = m_packed * g
    xm_pat = jnp.pad(xm_pat, ((0, m_pad - m_rows), (0, 0)))
    scale = jnp.pad(scale, (0, m_pad - m_rows))

    # Pack G pixels per lane-dense row: row r, lane g*Cp+j == channel j of pixel
    # r*G+g.  Pure reshapes on patches/scale; weight becomes block-diagonal.
    xm_packed = xm_pat.reshape(m_packed, packed_k)
    scale_packed = (jnp.broadcast_to(scale[:, None], (m_pad, c_out_p))
                    .reshape(m_packed, lane_w).astype(jnp.bfloat16))

    w_flat = weight.astype(jnp.float32).reshape(c_out, c_in * kh * kw).T
    w_flat = jnp.pad(w_flat, ((0, 0), (0, c_out_p - c_out))).astype(jnp.bfloat16)
    w_big = jnp.kron(jnp.eye(g, dtype=jnp.bfloat16), w_flat)  # (G*K, G*Cp)

    # VMEM budget: double-buffered xm/scale/out tiles + double-buffered weight,
    # clamped to 90% of the device VMEM capacity (v7x: 64 MiB per TensorCore).
    vmem_bytes = (2 * tm * packed_k * 2            # xm tiles (bf16)
                  + 2 * tm * lane_w * 2 * 2        # scale + out tiles (bf16)
                  + 2 * packed_k * lane_w * 2)     # weight (default double-buffer)
    try:
        vmem_cap = int(pltpu.get_tpu_info().vmem_capacity_bytes)
    except Exception:
        vmem_cap = 64 * 1024 * 1024
    vmem_limit = min(max(int(1.5 * vmem_bytes) + (4 << 20), 16 << 20),
                     int(0.9 * vmem_cap))

    out_packed = pl.pallas_call(
        _partial_conv_kernel,
        out_shape=jax.ShapeDtypeStruct((m_packed, lane_w), jnp.bfloat16),
        grid_spec=pltpu.PrefetchScalarGridSpec(
            num_scalar_prefetch=0,
            grid=(m_packed // tm,),
            in_specs=[
                pl.BlockSpec((tm, packed_k), lambda i: (i, 0)),
                pl.BlockSpec((tm, lane_w), lambda i: (i, 0)),
                pl.BlockSpec((packed_k, lane_w), lambda i: (0, 0)),
            ],
            out_specs=pl.BlockSpec((tm, lane_w), lambda i: (i, 0)),
        ),
        compiler_params=pltpu.CompilerParams(
            dimension_semantics=("parallel",),
            vmem_limit_bytes=vmem_limit,
        ),
    )(xm_packed, scale_packed, w_big)

    # Epilogue (one fused XLA pass): unpack lanes, drop padding, NHWC->NCHW and
    # bf16 -> f32 upcast.  The NCHW transpose is kept for module-semantics parity.
    out = out_packed.reshape(m_pad, c_out_p)[:m_rows, :c_out]
    out = out.reshape(n, ho, wo, c_out).transpose(0, 3, 1, 2).astype(jnp.float32)

    # new_mask is the same scalar for every output channel; broadcast in plain
    # JAX (module returns the full (N, C_out, Ho, Wo) tensor).
    nm = (msum > 0.0).astype(jnp.float32)[:, None, :, :]      # (N, 1, Ho, Wo)
    new_mask = jnp.broadcast_to(nm, (n, c_out, ho, wo))
    return out, new_mask


# --------------------------- Pure-JAX reference -------------------------------
def _reference(x, mask, weight, *, stride, padding):
    dn = jax.lax.conv_dimension_numbers(x.shape, weight.shape,
                                        ("NCHW", "OIHW", "NCHW"))
    conv = lambda a, w: jax.lax.conv_general_dilated(
        a, w, (stride, stride), [(padding, padding), (padding, padding)],
        dimension_numbers=dn)
    out = conv(x * mask, weight)
    out_mask = conv(mask, jnp.ones_like(weight))
    holes = out_mask == 0
    mask_sum = jnp.where(holes, 1.0, out_mask)
    output = jnp.where(holes, 0.0, out / mask_sum)
    new_mask = jnp.where(holes, 0.0, 1.0)
    return output, new_mask


if __name__ == "__main__":
    # Module config: PartialConv(in_channels=4, out_channels=4, kernel_size=3,
    #                            stride=1, padding=1, bias=False)
    N, C_IN, C_OUT, H, W, KS, STRIDE, PAD = 2, 4, 4, 16, 16, 3, 1, 1

    key = jax.random.PRNGKey(0)
    kx, km, kw_ = jax.random.split(key, 3)
    x = jax.random.normal(kx, (N, C_IN, H, W), dtype=jnp.float32)
    # binary mask (holes where 0), like an inpainting mask
    mask = (jax.random.uniform(km, (N, C_IN, H, W)) > 0.4).astype(jnp.float32)
    # deterministic conv weight (input_conv.weight); mask_conv.weight is
    # implicitly all-ones (handled via the mask patch sum), per the module init.
    weight = 0.1 * jax.random.normal(kw_, (C_OUT, C_IN, KS, KS), dtype=jnp.float32)

    out, new_mask = partial_conv(x, mask, weight,
                                 kernel_size=KS, stride=STRIDE, padding=PAD)
    jax.block_until_ready((out, new_mask))

    ref_out, ref_mask = _reference(x, mask, weight, stride=STRIDE, padding=PAD)
    assert out.shape == (N, C_OUT, H, W) and new_mask.shape == (N, C_OUT, H, W)
    # bf16 MXU inputs + bf16 scale/output -> bf16-level tolerance vs f32 ref.
    assert jnp.allclose(out, ref_out, rtol=2e-2, atol=2e-2), "output mismatch"
    assert jnp.allclose(new_mask, ref_mask), "mask mismatch"

    print("KERNEL_OK")
</pallas_src>

<mosaic_0001>
module attributes {stable_mosaic.version = 11 : i64} {
  func.func @_partial_conv_kernel(%arg0: i32, %arg1: memref<8x1152xbf16, #tpu.memory_space<vmem>>, %arg2: memref<8x128xbf16, #tpu.memory_space<vmem>>, %arg3: memref<1152x128xbf16, #tpu.memory_space<vmem>>, %arg4: memref<8x128xbf16, #tpu.memory_space<vmem>>) attributes {dimension_semantics = [#tpu.dimension_semantics<parallel>], iteration_bounds = array<i64: 2>, scalar_prefetch = 0 : i64, scratch_operands = 0 : i64, tpu.core_type = #tpu.core_type<tc>, window_params = [{transform_indices = @transform_0, window_bounds = array<i64: 8, 1152>}, {transform_indices = @transform_1, window_bounds = array<i64: 8, 128>}, {pipeline_mode = #tpu.pipeline_mode<synchronous>, transform_indices = @transform_2, window_bounds = array<i64: 1152, 128>}, {transform_indices = @transform_3, window_bounds = array<i64: 8, 128>}]} {
    %c0 = arith.constant 0 : index
    %c0_0 = arith.constant 0 : index
    %0 = vector.load %arg1[%c0, %c0_0] : memref<8x1152xbf16, #tpu.memory_space<vmem>>, vector<8x1152xbf16>
    %c0_1 = arith.constant 0 : index
    %c0_2 = arith.constant 0 : index
    %1 = vector.load %arg3[%c0_1, %c0_2] : memref<1152x128xbf16, #tpu.memory_space<vmem>>, vector<1152x128xbf16>
    %cst = arith.constant dense<0.000000e+00> : vector<8x128xf32>
    %2 = tpu.matmul %0, %1, %cst {dimension_numbers = #tpu.dot_dimension_numbers<[1], [0], [0], [1], [0, 0, 1, 1], [], []>} : vector<8x1152xbf16>, vector<1152x128xbf16>, vector<8x128xf32> -> vector<8x128xf32>
    %c0_3 = arith.constant 0 : index
    %c0_4 = arith.constant 0 : index
    %3 = vector.load %arg2[%c0_3, %c0_4] : memref<8x128xbf16, #tpu.memory_space<vmem>>, vector<8x128xbf16>
    %4 = arith.extf %3 : vector<8x128xbf16> to vector<8x128xf32>
    %5 = arith.mulf %2, %4 : vector<8x128xf32>
    %6 = arith.truncf %5 : vector<8x128xf32> to vector<8x128xbf16>
    %c0_5 = arith.constant 0 : index
    %c0_6 = arith.constant 0 : index
    %7 = vector.load %arg4[%c0_5, %c0_6] : memref<8x128xbf16, #tpu.memory_space<vmem>>, vector<8x128xbf16>
    tpu.vector_store %arg4[%c0_5, %c0_6], %6 {strides = array<i32>} : memref<8x128xbf16, #tpu.memory_space<vmem>>, vector<8x128xbf16>,
    return
  }
  func.func @transform_0(%arg0: i32) -> (i32, i32) {
    %c0_i32 = arith.constant 0 : i32
    %c0_i32_0 = arith.constant 0 : i32
    return %arg0, %c0_i32 : i32, i32
  }
  func.func @transform_1(%arg0: i32) -> (i32, i32) {
    %c0_i32 = arith.constant 0 : i32
    %c0_i32_0 = arith.constant 0 : i32
    return %arg0, %c0_i32 : i32, i32
  }
  func.func @transform_2(%arg0: i32) -> (i32, i32) {
    %c0_i32 = arith.constant 0 : i32
    %c0_i32_0 = arith.constant 0 : i32
    %c0_i32_1 = arith.constant 0 : i32
    return %c0_i32, %c0_i32_0 : i32, i32
  }
  func.func @transform_3(%arg0: i32) -> (i32, i32) {
    %c0_i32 = arith.constant 0 : i32
    %c0_i32_0 = arith.constant 0 : i32
    return %arg0, %c0_i32 : i32, i32
  }
}

</mosaic_0001>

<llo_original>
// kernel: partial_conv.1
$region0: #{partial_conv.1}
  #allocation0 [shape = 'u32[]', space=smem, size = 0x4, offset = 0x4, fixed_abs, tag = 'smem constant byte address 0x4 - core index']
  #allocation1 [shape = 'u32[144,128]{1,0:T(1,128)}', space=vmem, size = 0x12000, scoped, tag = 'internal scratch']
  %s0 = inlined_call_operand.vmem [shape: bf16[16,1152], index: 0, kind: input, shape index: {}]
  %s1 = inlined_call_operand.vmem [shape: bf16[16,128], index: 1, kind: input, shape index: {}]
  %s2 = inlined_call_operand.vmem [shape: bf16[1152,128], index: 2, kind: input, shape index: {}]
  %s3 = inlined_call_operand.vmem [shape: bf16[16,128], index: 3, kind: output, shape index: {}]
  %s4 = sld [smem:[#allocation0]]
  $region45: #{partial_conv.1} parent=0
    _
  %s6 = ssub.s32 1, %s4
  %s7 = scalar_select 0, %s6, %s4
  loop: start=0, step=1, limit=4
  $region2: #{partial_conv.1} parent=0 // loop_pre_header
    _
  $region3: #{partial_conv.1} parent=0 // loop_header
    %s9 = sphi 0, %s13
    %p10 = scmp.ge.s32.totalorder %s9, 4
    %s19 = sphi 0, %s21
    %s22 = sphi 0, %s19
    %s23 = sphi 0, %s22
    %s39 = sphi 0, %s23
    %s45 = sphi 0, %s47
    %s48 = sphi 0, %s45
    %s49 = sphi 0, %s48
    %s65 = sphi 0, %s49
    %s69 = sphi 0, %s69
    %s71 = sphi 0, %s69
    %s72 = sphi 0, %s71
    %s86 = sphi 0, %s72
    %s92 = sphi 0, %s94
    %s95 = sphi 0, %s92
    %s96 = sphi 0, %s95
    %s112 = sphi 0, %s96
  $region4: #{partial_conv.1} parent=0 // loop_header_branch
    %12 = sbr.rel (%p10) target = $region8
  $region5: #{partial_conv.1} parent=0 // loop_body
    %s14 = ssub.s32 %s9, 1
    %s15 = ssub.s32 %s9, 2
    %s16 = sadd.s32 %s9, 1
    %s17 = ssub.s32 %s9, %s16
    %p18 = scmp.eq.s32.totalorder %s17, 0
    %s20 = sadd.s32 %s19, 1
    %s21 = scalar_select %p18, %s19, %s20
    %p24 = pneg %p18
    %p25 = scmp.eq.s32.totalorder %s9, 1
    %p26 = por %p24, %p25
    %p27 = scmp.ne.s32.totalorder %s19, %s22
    %p28 = scmp.eq.s32.totalorder %s9, 0
    %p29 = por %p27, %p28
    %p30 = scmp.ne.s32.totalorder %s19, %s22
    %p31 = scmp.eq.s32.totalorder %s14, 1
    %p32 = por %p30, %p31
    %p33 = scmp.ne.s32.totalorder %s22, %s23
    %p34 = scmp.eq.s32.totalorder %s14, 0
    %p35 = por %p33, %p34
    %p36 = scmp.ne.s32.totalorder %s22, %s23
    %p37 = scmp.eq.s32.totalorder %s15, 1
    %p38 = por %p36, %p37
    %p40 = scmp.ne.s32.totalorder %s23, %s39
    %p41 = scmp.eq.s32.totalorder %s15, 0
    %p42 = por %p40, %p41
    %s43 = ssub.s32 %s9, %s16
    %p44 = scmp.eq.s32.totalorder %s43, 0
    %s46 = sadd.s32 %s45, 1
    %s47 = scalar_select %p44, %s45, %s46
    %p50 = pneg %p44
    %p51 = scmp.eq.s32.totalorder %s9, 1
    %p52 = por %p50, %p51
    %p53 = scmp.ne.s32.totalorder %s45, %s48
    %p54 = scmp.eq.s32.totalorder %s9, 0
    %p55 = por %p53, %p54
    %p56 = scmp.ne.s32.totalorder %s45, %s48
    %p57 = scmp.eq.s32.totalorder %s14, 1
    %p58 = por %p56, %p57
    %p59 = scmp.ne.s32.totalorder %s48, %s49
    %p60 = scmp.eq.s32.totalorder %s14, 0
    %p61 = por %p59, %p60
    %p62 = scmp.ne.s32.totalorder %s48, %s49
    %p63 = scmp.eq.s32.totalorder %s15, 1
    %p64 = por %p62, %p63
    %p66 = scmp.ne.s32.totalorder %s49, %s65
    %p67 = scmp.eq.s32.totalorder %s15, 0
    %p68 = por %p66, %p67
    %s70 = sadd.s32 %s69, 1
    %p73 = scmp.eq.s32.totalorder %s9, 1
    %p74 = scmp.ne.s32.totalorder %s69, %s71
    %p75 = scmp.eq.s32.totalorder %s9, 0
    %p76 = por %p74, %p75
    %p77 = scmp.ne.s32.totalorder %s69, %s71
    %p78 = scmp.eq.s32.totalorder %s14, 1
    %p79 = por %p77, %p78
    %p80 = scmp.ne.s32.totalorder %s71, %s72
    %p81 = scmp.eq.s32.totalorder %s14, 0
    %p82 = por %p80, %p81
    %p83 = scmp.ne.s32.totalorder %s71, %s72
    %p84 = scmp.eq.s32.totalorder %s15, 1
    %p85 = por %p83, %p84
    %p87 = scmp.ne.s32.totalorder %s72, %s86
    %p88 = scmp.eq.s32.totalorder %s15, 0
    %p89 = por %p87, %p88
    %s90 = ssub.s32 %s9, %s16
    %p91 = scmp.eq.s32.totalorder %s90, 0
    %s93 = sadd.s32 %s92, 1
    %s94 = scalar_select %p91, %s92, %s93
    %p97 = pneg %p91
    %p98 = scmp.eq.s32.totalorder %s9, 1
    %p99 = por %p97, %p98
    %p100 = scmp.ne.s32.totalorder %s92, %s95
    %p101 = scmp.eq.s32.totalorder %s9, 0
    %p102 = por %p100, %p101
    %p103 = scmp.ne.s32.totalorder %s92, %s95
    %p104 = scmp.eq.s32.totalorder %s14, 1
    %p105 = por %p103, %p104
    %p106 = scmp.ne.s32.totalorder %s95, %s96
    %p107 = scmp.eq.s32.totalorder %s14, 0
    %p108 = por %p106, %p107
    %p109 = scmp.ne.s32.totalorder %s95, %s96
    %p110 = scmp.eq.s32.totalorder %s15, 1
    %p111 = por %p109, %p110
    %p113 = scmp.ne.s32.totalorder %s96, %s112
    %p114 = scmp.eq.s32.totalorder %s15, 0
    %p115 = por %p113, %p114
    %p116 = scmp.le.s32.totalorder 1, %s9
    %p117 = scmp.lt.s32.totalorder %s9, 3
    %p118 = pnand %p116, %p117
    %p119 = pneg %p118
    // Predicated region
    $region9: #{partial_conv.1} parent=5 // pred_check
      _
    $region10: #{partial_conv.1} parent=5 // pred_check_branch
      %121 = sbr.rel (%p118) target = $region12
    $region11: #{partial_conv.1} parent=5 // pred_region
      %s122 = ssub.s32 %s9, 1
      // Predicated region
      $region13: #{partial_conv.1} parent=11 // pred_check
        %p123 = pneg %p82
      $region14: #{partial_conv.1} parent=11 // pred_check_branch
        %125 = sbr.rel (%p123) target = $region16
      $region15: #{partial_conv.1} parent=11 // pred_region
        _
      $region16: #{partial_conv.1} parent=11 // pred_fallthru
        _
    $region12: #{partial_conv.1} parent=5 // pred_fallthru
      _
    %p126 = scmp.lt.s32.totalorder %s9, 2
    // Predicated region
    $region17: #{partial_conv.1} parent=5 // pred_check
      %p127 = pneg %p126
    $region18: #{partial_conv.1} parent=5 // pred_check_branch
      %129 = sbr.rel (%p127) target = $region20
    $region19: #{partial_conv.1} parent=5 // pred_region
      // Predicated region
      $region21: #{partial_conv.1} parent=19 // pred_check
        %p130 = pneg %p29
      $region22: #{partial_conv.1} parent=19 // pred_check_branch
        %132 = sbr.rel (%p130) target = $region24
      $region23: #{partial_conv.1} parent=19 // pred_region
        %p133 = scmp.lt.s32.totalorder %s9, 1
        %s134 = scalar_select %p133, %s9, 1
        %s135 = smul.addr %s134, 9
        %s136 = smul.addr %s135, 4
        %s137 = scalar_lea.vmem %s0, %s136
      $region24: #{partial_conv.1} parent=19 // pred_fallthru
        _
      // Predicated region
      $region25: #{partial_conv.1} parent=19 // pred_check
        %p138 = pneg %p55
      $region26: #{partial_conv.1} parent=19 // pred_check_branch
        %140 = sbr.rel (%p138) target = $region28
      $region27: #{partial_conv.1} parent=19 // pred_region
        %p141 = scmp.lt.s32.totalorder %s9, 1
        %s142 = scalar_select %p141, %s9, 1
        %s143 = smul.addr %s142, 4
        %s144 = scalar_lea.vmem %s1, %s143
      $region28: #{partial_conv.1} parent=19 // pred_fallthru
        _
    $region20: #{partial_conv.1} parent=5 // pred_fallthru
      _
    %p145 = scmp.le.s32.totalorder 1, %s9
    %p146 = scmp.lt.s32.totalorder %s9, 3
    %p147 = pnand %p145, %p146
    %p148 = pneg %p147
    // Predicated region
    $region29: #{partial_conv.1} parent=5 // pred_check
      _
    $region30: #{partial_conv.1} parent=5 // pred_check_branch
      %150 = sbr.rel (%p147) target = $region32
    $region31: #{partial_conv.1} parent=5 // pred_region
      %s151 = ssub.s32 %s9, 1
      %p152 = scmp.lt.s32.totalorder %s14, 1
      %s153 = scalar_select %p152, %s14, 1
      %s154 = smul.addr %s153, 9
      %s155 = smul.addr %s154, 4
      %s156 = scalar_lea.vmem %s0, %s155
      %p157 = pneg %p35
      %p158 = pneg %p32
      %p159 = scmp.lt.s32.totalorder %s14, 1
      %s160 = scalar_select %p159, %s14, 1
      %s161 = smul.addr %s160, 4
      %s162 = scalar_lea.vmem %s1, %s161
      %p163 = pneg %p61
      %p164 = pneg %p58
      %p165 = pneg %p82
      %p166 = pneg %p79
      %p167 = pneg %p108
      %p168 = pneg %p105
      %p169 = scmp.lt.s32.totalorder %s14, 1
      %s170 = scalar_select %p169, %s14, 1
      %s171 = smul.addr %s170, 4
      %s172 = scalar_lea.vmem %s3, %s171
      %p173 = scmp.lt.s32.totalorder %s14, 1
      %s174 = scalar_select %p173, %s14, 1
      %s175 = smul.addr %s174, 9
      %s176 = smul.addr %s175, 4
      %s177 = scalar_lea.vmem %s0, %s176
      %p178 = scmp.lt.s32.totalorder %s14, 1
      %s179 = scalar_select %p178, %s14, 1
      %s180 = smul.addr %s179, 4
      %s181 = scalar_lea.vmem %s1, %s180
      %p182 = scmp.lt.s32.totalorder %s14, 1
      %s183 = scalar_select %p182, %s14, 1
      %s184 = smul.addr %s183, 4
      %s185 = scalar_lea.vmem %s3, %s184
      %v187 = vld [vmem:[%s177] sm:$0xff]
      %v188 = vld [vmem:[%s177 + $0x8] sm:$0xff]
      %v189 = vld [vmem:[%s177 + $0x10] sm:$0xff]
      %v190 = vld [vmem:[%s177 + $0x18] sm:$0xff]
      %v191 = vld [vmem:[%s177 + $0x20] sm:$0xf]
      %v192 = vld [vmem:[%s2] sm:$0xf]
      %v193 = vld [vmem:[%s2 + $0x4] sm:$0xf]
      %v194 = vld [vmem:[%s2 + $0x8] sm:$0xf]
      %v195 = vld [vmem:[%s2 + $0xc] sm:$0xf]
      %v196 = vld [vmem:[%s2 + $0x10] sm:$0xf]
      %v197 = vld [vmem:[%s2 + $0x14] sm:$0xf]
      %v198 = vld [vmem:[%s2 + $0x18] sm:$0xf]
      %v199 = vld [vmem:[%s2 + $0x1c] sm:$0xf]
      %v200 = vld [vmem:[%s2 + $0x20] sm:$0xf]
      %v201 = vld [vmem:[%s2 + $0x24] sm:$0xf]
      %v202 = vld [vmem:[%s2 + $0x28] sm:$0xf]
      %v203 = vld [vmem:[%s2 + $0x2c] sm:$0xf]
      %v204 = vld [vmem:[%s2 + $0x30] sm:$0xf]
      %v205 = vld [vmem:[%s2 + $0x34] sm:$0xf]
      %v206 = vld [vmem:[%s2 + $0x38] sm:$0xf]
      %v207 = vld [vmem:[%s2 + $0x3c] sm:$0xf]
      %v208 = vld [vmem:[%s2 + $0x40] sm:$0xf]
      %v209 = vld [vmem:[%s2 + $0x44] sm:$0xf]
      %v210 = vld [vmem:[%s2 + $0x48] sm:$0xf]
      %v211 = vld [vmem:[%s2 + $0x4c] sm:$0xf]
      %v212 = vld [vmem:[%s2 + $0x50] sm:$0xf]
      %v213 = vld [vmem:[%s2 + $0x54] sm:$0xf]
      %v214 = vld [vmem:[%s2 + $0x58] sm:$0xf]
      %v215 = vld [vmem:[%s2 + $0x5c] sm:$0xf]
      %v216 = vld [vmem:[%s2 + $0x60] sm:$0xf]
      %v217 = vld [vmem:[%s2 + $0x64] sm:$0xf]
      %v218 = vld [vmem:[%s2 + $0x68] sm:$0xf]
      %v219 = vld [vmem:[%s2 + $0x6c] sm:$0xf]
      %v220 = vld [vmem:[%s2 + $0x70] sm:$0xf]
      %v221 = vld [vmem:[%s2 + $0x74] sm:$0xf]
      %v222 = vld [vmem:[%s2 + $0x78] sm:$0xf]
      %v223 = vld [vmem:[%s2 + $0x7c] sm:$0xf]
      %v224 = vld [vmem:[%s2 + $0x80] sm:$0xf]
      %v225 = vld [vmem:[%s2 + $0x84] sm:$0xf]
      %v226 = vld [vmem:[%s2 + $0x88] sm:$0xf]
      %v227 = vld [vmem:[%s2 + $0x8c] sm:$0xf]
      %v228 = vld [vmem:[%s2 + $0x90] sm:$0xf]
      %v229 = vld [vmem:[%s2 + $0x94] sm:$0xf]
      %v230 = vld [vmem:[%s2 + $0x98] sm:$0xf]
      %v231 = vld [vmem:[%s2 + $0x9c] sm:$0xf]
      %v232 = vld [vmem:[%s2 + $0xa0] sm:$0xf]
      %v233 = vld [vmem:[%s2 + $0xa4] sm:$0xf]
      %v234 = vld [vmem:[%s2 + $0xa8] sm:$0xf]
      %v235 = vld [vmem:[%s2 + $0xac] sm:$0xf]
      %v236 = vld [vmem:[%s2 + $0xb0] sm:$0xf]
      %v237 = vld [vmem:[%s2 + $0xb4] sm:$0xf]
      %v238 = vld [vmem:[%s2 + $0xb8] sm:$0xf]
      %v239 = vld [vmem:[%s2 + $0xbc] sm:$0xf]
      %v240 = vld [vmem:[%s2 + $0xc0] sm:$0xf]
      %v241 = vld [vmem:[%s2 + $0xc4] sm:$0xf]
      %v242 = vld [vmem:[%s2 + $0xc8] sm:$0xf]
      %v243 = vld [vmem:[%s2 + $0xcc] sm:$0xf]
      %v244 = vld [vmem:[%s2 + $0xd0] sm:$0xf]
      %v245 = vld [vmem:[%s2 + $0xd4] sm:$0xf]
      %v246 = vld [vmem:[%s2 + $0xd8] sm:$0xf]
      %v247 = vld [vmem:[%s2 + $0xdc] sm:$0xf]
      %v248 = vld [vmem:[%s2 + $0xe0] sm:$0xf]
      %v249 = vld [vmem:[%s2 + $0xe4] sm:$0xf]
      %v250 = vld [vmem:[%s2 + $0xe8] sm:$0xf]
      %v251 = vld [vmem:[%s2 + $0xec] sm:$0xf]
      %v252 = vld [vmem:[%s2 + $0xf0] sm:$0xf]
      %v253 = vld [vmem:[%s2 + $0xf4] sm:$0xf]
      %v254 = vld [vmem:[%s2 + $0xf8] sm:$0xf]
      %v255 = vld [vmem:[%s2 + $0xfc] sm:$0xf]
      %v256 = vld [vmem:[%s2 + $0x100] sm:$0xf]
      %v257 = vld [vmem:[%s2 + $0x104] sm:$0xf]
      %v258 = vld [vmem:[%s2 + $0x108] sm:$0xf]
      %v259 = vld [vmem:[%s2 + $0x10c] sm:$0xf]
      %v260 = vld [vmem:[%s2 + $0x110] sm:$0xf]
      %v261 = vld [vmem:[%s2 + $0x114] sm:$0xf]
      %v262 = vld [vmem:[%s2 + $0x118] sm:$0xf]
      %v263 = vld [vmem:[%s2 + $0x11c] sm:$0xf]
      %v264 = vld [vmem:[%s2 + $0x120] sm:$0xf]
      %v265 = vld [vmem:[%s2 + $0x124] sm:$0xf]
      %v266 = vld [vmem:[%s2 + $0x128] sm:$0xf]
      %v267 = vld [vmem:[%s2 + $0x12c] sm:$0xf]
      %v268 = vld [vmem:[%s2 + $0x130] sm:$0xf]
      %v269 = vld [vmem:[%s2 + $0x134] sm:$0xf]
      %v270 = vld [vmem:[%s2 + $0x138] sm:$0xf]
      %v271 = vld [vmem:[%s2 + $0x13c] sm:$0xf]
      %v272 = vld [vmem:[%s2 + $0x140] sm:$0xf]
      %v273 = vld [vmem:[%s2 + $0x144] sm:$0xf]
      %v274 = vld [vmem:[%s2 + $0x148] sm:$0xf]
      %v275 = vld [vmem:[%s2 + $0x14c] sm:$0xf]
      %v276 = vld [vmem:[%s2 + $0x150] sm:$0xf]
      %v277 = vld [vmem:[%s2 + $0x154] sm:$0xf]
      %v278 = vld [vmem:[%s2 + $0x158] sm:$0xf]
      %v279 = vld [vmem:[%s2 + $0x15c] sm:$0xf]
      %v280 = vld [vmem:[%s2 + $0x160] sm:$0xf]
      %v281 = vld [vmem:[%s2 + $0x164] sm:$0xf]
      %v282 = vld [vmem:[%s2 + $0x168] sm:$0xf]
      %v283 = vld [vmem:[%s2 + $0x16c] sm:$0xf]
      %v284 = vld [vmem:[%s2 + $0x170] sm:$0xf]
      %v285 = vld [vmem:[%s2 + $0x174] sm:$0xf]
      %v286 = vld [vmem:[%s2 + $0x178] sm:$0xf]
      %v287 = vld [vmem:[%s2 + $0x17c] sm:$0xf]
      %v288 = vld [vmem:[%s2 + $0x180] sm:$0xf]
      %v289 = vld [vmem:[%s2 + $0x184] sm:$0xf]
      %v290 = vld [vmem:[%s2 + $0x188] sm:$0xf]
      %v291 = vld [vmem:[%s2 + $0x18c] sm:$0xf]
      %v292 = vld [vmem:[%s2 + $0x190] sm:$0xf]
      %v293 = vld [vmem:[%s2 + $0x194] sm:$0xf]
      %v294 = vld [vmem:[%s2 + $0x198] sm:$0xf]
      %v295 = vld [vmem:[%s2 + $0x19c] sm:$0xf]
      %v296 = vld [vmem:[%s2 + $0x1a0] sm:$0xf]
      %v297 = vld [vmem:[%s2 + $0x1a4] sm:$0xf]
      %v298 = vld [vmem:[%s2 + $0x1a8] sm:$0xf]
      %v299 = vld [vmem:[%s2 + $0x1ac] sm:$0xf]
      %v300 = vld [vmem:[%s2 + $0x1b0] sm:$0xf]
      %v301 = vld [vmem:[%s2 + $0x1b4] sm:$0xf]
      %v302 = vld [vmem:[%s2 + $0x1b8] sm:$0xf]
      %v303 = vld [vmem:[%s2 + $0x1bc] sm:$0xf]
      %v304 = vld [vmem:[%s2 + $0x1c0] sm:$0xf]
      %v305 = vld [vmem:[%s2 + $0x1c4] sm:$0xf]
      %v306 = vld [vmem:[%s2 + $0x1c8] sm:$0xf]
      %v307 = vld [vmem:[%s2 + $0x1cc] sm:$0xf]
      %v308 = vld [vmem:[%s2 + $0x1d0] sm:$0xf]
      %v309 = vld [vmem:[%s2 + $0x1d4] sm:$0xf]
      %v310 = vld [vmem:[%s2 + $0x1d8] sm:$0xf]
      %v311 = vld [vmem:[%s2 + $0x1dc] sm:$0xf]
      %v312 = vld [vmem:[%s2 + $0x1e0] sm:$0xf]
      %v313 = vld [vmem:[%s2 + $0x1e4] sm:$0xf]
      %v314 = vld [vmem:[%s2 + $0x1e8] sm:$0xf]
      %v315 = vld [vmem:[%s2 + $0x1ec] sm:$0xf]
      %v316 = vld [vmem:[%s2 + $0x1f0] sm:$0xf]
      %v317 = vld [vmem:[%s2 + $0x1f4] sm:$0xf]
      %v318 = vld [vmem:[%s2 + $0x1f8] sm:$0xf]
      %v319 = vld [vmem:[%s2 + $0x1fc] sm:$0xf]
      %v320 = vld [vmem:[%s2 + $0x200] sm:$0xf]
      %v321 = vld [vmem:[%s2 + $0x204] sm:$0xf]
      %v322 = vld [vmem:[%s2 + $0x208] sm:$0xf]
      %v323 = vld [vmem:[%s2 + $0x20c] sm:$0xf]
      %v324 = vld [vmem:[%s2 + $0x210] sm:$0xf]
      %v325 = vld [vmem:[%s2 + $0x214] sm:$0xf]
      %v326 = vld [vmem:[%s2 + $0x218] sm:$0xf]
      %v327 = vld [vmem:[%s2 + $0x21c] sm:$0xf]
      %v328 = vld [vmem:[%s2 + $0x220] sm:$0xf]
      %v329 = vld [vmem:[%s2 + $0x224] sm:$0xf]
      %v330 = vld [vmem:[%s2 + $0x228] sm:$0xf]
      %v331 = vld [vmem:[%s2 + $0x22c] sm:$0xf]
      %v332 = vld [vmem:[%s2 + $0x230] sm:$0xf]
      %v333 = vld [vmem:[%s2 + $0x234] sm:$0xf]
      %v334 = vld [vmem:[%s2 + $0x238] sm:$0xf]
      %v335 = vld [vmem:[%s2 + $0x23c] sm:$0xf]
      %v341 = vunpack.c.l.b16 %v187
      %v342 = vunpack.c.h.b16 %v187
      %v343 = vunpack.c.l.b16 %v188
      %v344 = vunpack.c.h.b16 %v188
      %v345 = vunpack.c.l.b16 %v189
      %v346 = vunpack.c.h.b16 %v189
      %v347 = vunpack.c.l.b16 %v190
      %v348 = vunpack.c.h.b16 %v190
      %v349 = vunpack.c.l.b16 %v191
      %v350 = vpack.c.b16 %v341, %v341
      %v351 = vpack.c.b16 %v342, %v342
      %v352 = vpack.c.b16 %v343, %v343
      %v353 = vpack.c.b16 %v344, %v344
      %v354 = vpack.c.b16 %v345, %v345
      %v355 = vpack.c.b16 %v346, %v346
      %v356 = vpack.c.b16 %v347, %v347
      %v357 = vpack.c.b16 %v348, %v348
      %v358 = vpack.c.b16 %v349, %v349
      %v512 = vunpack.c.l.b16 %v192
      %v513 = vunpack.c.l.b16 %v193
      %v514 = vunpack.c.l.b16 %v194
      %v515 = vunpack.c.l.b16 %v195
      %v516 = vunpack.c.l.b16 %v196
      %v517 = vunpack.c.l.b16 %v197
      %v518 = vunpack.c.l.b16 %v198
      %v519 = vunpack.c.l.b16 %v199
      %v520 = vunpack.c.l.b16 %v200
      %v521 = vunpack.c.l.b16 %v201
      %v522 = vunpack.c.l.b16 %v202
      %v523 = vunpack.c.l.b16 %v203
      %v524 = vunpack.c.l.b16 %v204
      %v525 = vunpack.c.l.b16 %v205
      %v526 = vunpack.c.l.b16 %v206
      %v527 = vunpack.c.l.b16 %v207
      %v528 = vunpack.c.l.b16 %v208
      %v529 = vunpack.c.l.b16 %v209
      %v530 = vunpack.c.l.b16 %v210
      %v531 = vunpack.c.l.b16 %v211
      %v532 = vunpack.c.l.b16 %v212
      %v533 = vunpack.c.l.b16 %v213
      %v534 = vunpack.c.l.b16 %v214
      %v535 = vunpack.c.l.b16 %v215
      %v536 = vunpack.c.l.b16 %v216
      %v537 = vunpack.c.l.b16 %v217
      %v538 = vunpack.c.l.b16 %v218
      %v539 = vunpack.c.l.b16 %v219
      %v540 = vunpack.c.l.b16 %v220
      %v541 = vunpack.c.l.b16 %v221
      %v542 = vunpack.c.l.b16 %v222
      %v543 = vunpack.c.l.b16 %v223
      %v544 = vunpack.c.l.b16 %v224
      %v545 = vunpack.c.l.b16 %v225
      %v546 = vunpack.c.l.b16 %v226
      %v547 = vunpack.c.l.b16 %v227
      %v548 = vunpack.c.l.b16 %v228
      %v549 = vunpack.c.l.b16 %v229
      %v550 = vunpack.c.l.b16 %v230
      %v551 = vunpack.c.l.b16 %v231
      %v552 = vunpack.c.l.b16 %v232
      %v553 = vunpack.c.l.b16 %v233
      %v554 = vunpack.c.l.b16 %v234
      %v555 = vunpack.c.l.b16 %v235
      %v556 = vunpack.c.l.b16 %v236
      %v557 = vunpack.c.l.b16 %v237
      %v558 = vunpack.c.l.b16 %v238
      %v559 = vunpack.c.l.b16 %v239
      %v560 = vunpack.c.l.b16 %v240
      %v561 = vunpack.c.l.b16 %v241
      %v562 = vunpack.c.l.b16 %v242
      %v563 = vunpack.c.l.b16 %v243
      %v564 = vunpack.c.l.b16 %v244
      %v565 = vunpack.c.l.b16 %v245
      %v566 = vunpack.c.l.b16 %v246
      %v567 = vunpack.c.l.b16 %v247
      %v568 = vunpack.c.l.b16 %v248
      %v569 = vunpack.c.l.b16 %v249
      %v570 = vunpack.c.l.b16 %v250
      %v571 = vunpack.c.l.b16 %v251
      %v572 = vunpack.c.l.b16 %v252
      %v573 = vunpack.c.l.b16 %v253
      %v574 = vunpack.c.l.b16 %v254
      %v575 = vunpack.c.l.b16 %v255
      %v576 = vunpack.c.l.b16 %v256
      %v577 = vunpack.c.l.b16 %v257
      %v578 = vunpack.c.l.b16 %v258
      %v579 = vunpack.c.l.b16 %v259
      %v580 = vunpack.c.l.b16 %v260
      %v581 = vunpack.c.l.b16 %v261
      %v582 = vunpack.c.l.b16 %v262
      %v583 = vunpack.c.l.b16 %v263
      %v584 = vunpack.c.l.b16 %v264
      %v585 = vunpack.c.l.b16 %v265
      %v586 = vunpack.c.l.b16 %v266
      %v587 = vunpack.c.l.b16 %v267
      %v588 = vunpack.c.l.b16 %v268
      %v589 = vunpack.c.l.b16 %v269
      %v590 = vunpack.c.l.b16 %v270
      %v591 = vunpack.c.l.b16 %v271
      %v592 = vunpack.c.l.b16 %v272
      %v593 = vunpack.c.l.b16 %v273
      %v594 = vunpack.c.l.b16 %v274
      %v595 = vunpack.c.l.b16 %v275
      %v596 = vunpack.c.l.b16 %v276
      %v597 = vunpack.c.l.b16 %v277
      %v598 = vunpack.c.l.b16 %v278
      %v599 = vunpack.c.l.b16 %v279
      %v600 = vunpack.c.l.b16 %v280
      %v601 = vunpack.c.l.b16 %v281
      %v602 = vunpack.c.l.b16 %v282
      %v603 = vunpack.c.l.b16 %v283
      %v604 = vunpack.c.l.b16 %v284
      %v605 = vunpack.c.l.b16 %v285
      %v606 = vunpack.c.l.b16 %v286
      %v607 = vunpack.c.l.b16 %v287
      %v608 = vunpack.c.l.b16 %v288
      %v609 = vunpack.c.l.b16 %v289
      %v610 = vunpack.c.l.b16 %v290
      %v611 = vunpack.c.l.b16 %v291
      %v612 = vunpack.c.l.b16 %v292
      %v613 = vunpack.c.l.b16 %v293
      %v614 = vunpack.c.l.b16 %v294
      %v615 = vunpack.c.l.b16 %v295
      %v616 = vunpack.c.l.b16 %v296
      %v617 = vunpack.c.l.b16 %v297
      %v618 = vunpack.c.l.b16 %v298
      %v619 = vunpack.c.l.b16 %v299
      %v620 = vunpack.c.l.b16 %v300
      %v621 = vunpack.c.l.b16 %v301
      %v622 = vunpack.c.l.b16 %v302
      %v623 = vunpack.c.l.b16 %v303
      %v624 = vunpack.c.l.b16 %v304
      %v625 = vunpack.c.l.b16 %v305
      %v626 = vunpack.c.l.b16 %v306
      %v627 = vunpack.c.l.b16 %v307
      %v628 = vunpack.c.l.b16 %v308
      %v629 = vunpack.c.l.b16 %v309
      %v630 = vunpack.c.l.b16 %v310
      %v631 = vunpack.c.l.b16 %v311
      %v632 = vunpack.c.l.b16 %v312
      %v633 = vunpack.c.l.b16 %v313
      %v634 = vunpack.c.l.b16 %v314
      %v635 = vunpack.c.l.b16 %v315
      %v636 = vunpack.c.l.b16 %v316
      %v637 = vunpack.c.l.b16 %v317
      %v638 = vunpack.c.l.b16 %v318
      %v639 = vunpack.c.l.b16 %v319
      %v640 = vunpack.c.l.b16 %v320
      %v641 = vunpack.c.l.b16 %v321
      %v642 = vunpack.c.l.b16 %v322
      %v643 = vunpack.c.l.b16 %v323
      %v644 = vunpack.c.l.b16 %v324
      %v645 = vunpack.c.l.b16 %v325
      %v646 = vunpack.c.l.b16 %v326
      %v647 = vunpack.c.l.b16 %v327
      %v648 = vunpack.c.l.b16 %v328
      %v649 = vunpack.c.l.b16 %v329
      %v650 = vunpack.c.l.b16 %v330
      %v651 = vunpack.c.l.b16 %v331
      %v652 = vunpack.c.l.b16 %v332
      %v653 = vunpack.c.l.b16 %v333
      %v654 = vunpack.c.l.b16 %v334
      %v655 = vunpack.c.l.b16 %v335
      %v656 = vpack.c.b16 %v513, %v512
      %v657 = vpack.c.b16 %v515, %v514
      %v658 = vpack.c.b16 %v517, %v516
      %v659 = vpack.c.b16 %v519, %v518
      %v660 = vpack.c.b16 %v521, %v520
      %v661 = vpack.c.b16 %v523, %v522
      %v662 = vpack.c.b16 %v525, %v524
      %v663 = vpack.c.b16 %v527, %v526
      %v664 = vpack.c.b16 %v529, %v528
      %v665 = vpack.c.b16 %v531, %v530
      %v666 = vpack.c.b16 %v533, %v532
      %v667 = vpack.c.b16 %v535, %v534
      %v668 = vpack.c.b16 %v537, %v536
      %v669 = vpack.c.b16 %v539, %v538
      %v670 = vpack.c.b16 %v541, %v540
      %v671 = vpack.c.b16 %v543, %v542
      %v672 = vpack.c.b16 %v545, %v544
      %v673 = vpack.c.b16 %v547, %v546
      %v674 = vpack.c.b16 %v549, %v548
      %v675 = vpack.c.b16 %v551, %v550
      %v676 = vpack.c.b16 %v553, %v552
      %v677 = vpack.c.b16 %v555, %v554
      %v678 = vpack.c.b16 %v557, %v556
      %v679 = vpack.c.b16 %v559, %v558
      %v680 = vpack.c.b16 %v561, %v560
      %v681 = vpack.c.b16 %v563, %v562
      %v682 = vpack.c.b16 %v565, %v564
      %v683 = vpack.c.b16 %v567, %v566
      %v684 = vpack.c.b16 %v569, %v568
      %v685 = vpack.c.b16 %v571, %v570
      %v686 = vpack.c.b16 %v573, %v572
      %v687 = vpack.c.b16 %v575, %v574
      %v688 = vpack.c.b16 %v577, %v576
      %v689 = vpack.c.b16 %v579, %v578
      %v690 = vpack.c.b16 %v581, %v580
      %v691 = vpack.c.b16 %v583, %v582
      %v692 = vpack.c.b16 %v585, %v584
      %v693 = vpack.c.b16 %v587, %v586
      %v694 = vpack.c.b16 %v589, %v588
      %v695 = vpack.c.b16 %v591, %v590
      %v696 = vpack.c.b16 %v593, %v592
      %v697 = vpack.c.b16 %v595, %v594
      %v698 = vpack.c.b16 %v597, %v596
      %v699 = vpack.c.b16 %v599, %v598
      %v700 = vpack.c.b16 %v601, %v600
      %v701 = vpack.c.b16 %v603, %v602
      %v702 = vpack.c.b16 %v605, %v604
      %v703 = vpack.c.b16 %v607, %v606
      %v704 = vpack.c.b16 %v609, %v608
      %v705 = vpack.c.b16 %v611, %v610
      %v706 = vpack.c.b16 %v613, %v612
      %v707 = vpack.c.b16 %v615, %v614
      %v708 = vpack.c.b16 %v617, %v616
      %v709 = vpack.c.b16 %v619, %v618
      %v710 = vpack.c.b16 %v621, %v620
      %v711 = vpack.c.b16 %v623, %v622
      %v712 = vpack.c.b16 %v625, %v624
      %v713 = vpack.c.b16 %v627, %v626
      %v714 = vpack.c.b16 %v629, %v628
      %v715 = vpack.c.b16 %v631, %v630
      %v716 = vpack.c.b16 %v633, %v632
      %v717 = vpack.c.b16 %v635, %v634
      %v718 = vpack.c.b16 %v637, %v636
      %v719 = vpack.c.b16 %v639, %v638
      %v720 = vpack.c.b16 %v641, %v640
      %v721 = vpack.c.b16 %v643, %v642
      %v722 = vpack.c.b16 %v645, %v644
      %v723 = vpack.c.b16 %v647, %v646
      %v724 = vpack.c.b16 %v649, %v648
      %v725 = vpack.c.b16 %v651, %v650
      %v726 = vpack.c.b16 %v653, %v652
      %v727 = vpack.c.b16 %v655, %v654
      %800 = vmatprep.subr.bf16.mxu0 0
      %801 = vmatpush1.bf16.msra.mxu0 %v656
      %802 = vmatprep.subr.bf16.mxu0 0
      %803 = vmatpush1.bf16.msra.mxu0 %v657
      %804 = vmatprep.subr.bf16.mxu0 0
      %805 = vmatpush1.bf16.msra.mxu0 %v658
      %806 = vmatprep.subr.bf16.mxu0 0
      %807 = vmatpush1.bf16.msra.mxu0 %v659
      %808 = vmatprep.subr.bf16.mxu0 0
      %809 = vmatpush1.bf16.msra.mxu0 %v660
      %810 = vmatprep.subr.bf16.mxu0 0
      %811 = vmatpush1.bf16.msra.mxu0 %v661
      %812 = vmatprep.subr.bf16.mxu0 0
      %813 = vmatpush1.bf16.msra.mxu0 %v662
      %814 = vmatprep.subr.bf16.mxu0 0
      %815 = vmatpush1.bf16.msra.mxu0 %v663
      %816 = vmatprep.subr.bf16.mxu0 0
      %817 = vmatpush1.bf16.msra.mxu0 %v664
      %818 = vmatprep.subr.bf16.mxu0 0
      %819 = vmatpush1.bf16.msra.mxu0 %v665
      %820 = vmatprep.subr.bf16.mxu0 0
      %821 = vmatpush1.bf16.msra.mxu0 %v666
      %822 = vmatprep.subr.bf16.mxu0 0
      %823 = vmatpush1.bf16.msra.mxu0 %v667
      %824 = vmatprep.subr.bf16.mxu0 0
      %825 = vmatpush1.bf16.msra.mxu0 %v668
      %826 = vmatprep.subr.bf16.mxu0 0
      %827 = vmatpush1.bf16.msra.mxu0 %v669
      %828 = vmatprep.subr.bf16.mxu0 0
      %829 = vmatpush1.bf16.msra.mxu0 %v670
      %830 = vmatprep.subr.bf16.mxu0 0
      %831 = vmatpush1.bf16.msra.mxu0 %v671
      %832 = vmatprep.mubr.bf16.mxu0 %v351
      %833 = vmatmul.mubr.bf16.gmra.mrb[0].mxu0 %v350
      %v834 = vpop.f32.mrb[0].mxu0
      %v835 = vadd.f32 0.0, %v834
      %v836 = vpop.f32.mrb[0].mxu0
      %v837 = vpop.f32.mrb[0].mxu0
      %v838 = vpop.f32.mrb[0].mxu0
      %839 = vdwg.mxu0
      %840 = vmatprep.subr.bf16.mxu0 0
      %841 = vmatpush1.bf16.msra.mxu0 %v672
      %842 = vmatprep.subr.bf16.mxu0 0
      %843 = vmatpush1.bf16.msra.mxu0 %v673
      %844 = vmatprep.subr.bf16.mxu0 0
      %845 = vmatpush1.bf16.msra.mxu0 %v674
      %846 = vmatprep.subr.bf16.mxu0 0
      %847 = vmatpush1.bf16.msra.mxu0 %v675
      %848 = vmatprep.subr.bf16.mxu0 0
      %849 = vmatpush1.bf16.msra.mxu0 %v676
      %850 = vmatprep.subr.bf16.mxu0 0
      %851 = vmatpush1.bf16.msra.mxu0 %v677
      %852 = vmatprep.subr.bf16.mxu0 0
      %853 = vmatpush1.bf16.msra.mxu0 %v678
      %854 = vmatprep.subr.bf16.mxu0 0
      %855 = vmatpush1.bf16.msra.mxu0 %v679
      %856 = vmatprep.subr.bf16.mxu0 0
      %857 = vmatpush1.bf16.msra.mxu0 %v680
      %858 = vmatprep.subr.bf16.mxu0 0
      %859 = vmatpush1.bf16.msra.mxu0 %v681
      %860 = vmatprep.subr.bf16.mxu0 0
      %861 = vmatpush1.bf16.msra.mxu0 %v682
      %862 = vmatprep.subr.bf16.mxu0 0
      %863 = vmatpush1.bf16.msra.mxu0 %v683
      %864 = vmatprep.subr.bf16.mxu0 0
      %865 = vmatpush1.bf16.msra.mxu0 %v684
      %866 = vmatprep.subr.bf16.mxu0 0
      %867 = vmatpush1.bf16.msra.mxu0 %v685
      %868 = vmatprep.subr.bf16.mxu0 0
      %869 = vmatpush1.bf16.msra.mxu0 %v686
      %870 = vmatprep.subr.bf16.mxu0 0
      %871 = vmatpush1.bf16.msra.mxu0 %v687
      %872 = vmatprep.mubr.bf16.mxu0 %v353
      %873 = vmatmul.mubr.bf16.gmra.mrb[0].mxu0 %v352
      %v874 = vpop.f32.mrb[0].mxu0
      %v875 = vadd.f32 %v835, %v874
      %v876 = vpop.f32.mrb[0].mxu0
      %v877 = vpop.f32.mrb[0].mxu0
      %v878 = vpop.f32.mrb[0].mxu0
      %879 = vdwg.mxu0
      %880 = vmatprep.subr.bf16.mxu0 0
      %881 = vmatpush1.bf16.msra.mxu0 %v688
      %882 = vmatprep.subr.bf16.mxu0 0
      %883 = vmatpush1.bf16.msra.mxu0 %v689
      %884 = vmatprep.subr.bf16.mxu0 0
      %885 = vmatpush1.bf16.msra.mxu0 %v690
      %886 = vmatprep.subr.bf16.mxu0 0
      %887 = vmatpush1.bf16.msra.mxu0 %v691
      %888 = vmatprep.subr.bf16.mxu0 0
      %889 = vmatpush1.bf16.msra.mxu0 %v692
      %890 = vmatprep.subr.bf16.mxu0 0
      %891 = vmatpush1.bf16.msra.mxu0 %v693
      %892 = vmatprep.subr.bf16.mxu0 0
      %893 = vmatpush1.bf16.msra.mxu0 %v694
      %894 = vmatprep.subr.bf16.mxu0 0
      %895 = vmatpush1.bf16.msra.mxu0 %v695
      %896 = vmatprep.subr.bf16.mxu0 0
      %897 = vmatpush1.bf16.msra.mxu0 %v696
      %898 = vmatprep.subr.bf16.mxu0 0
      %899 = vmatpush1.bf16.msra.mxu0 %v697
      %900 = vmatprep.subr.bf16.mxu0 0
      %901 = vmatpush1.bf16.msra.mxu0 %v698
      %902 = vmatprep.subr.bf16.mxu0 0
      %903 = vmatpush1.bf16.msra.mxu0 %v699
      %904 = vmatprep.subr.bf16.mxu0 0
      %905 = vmatpush1.bf16.msra.mxu0 %v700
      %906 = vmatprep.subr.bf16.mxu0 0
      %907 = vmatpush1.bf16.msra.mxu0 %v701
      %908 = vmatprep.subr.bf16.mxu0 0
      %909 = vmatpush1.bf16.msra.mxu0 %v702
      %910 = vmatprep.subr.bf16.mxu0 0
      %911 = vmatpush1.bf16.msra.mxu0 %v703
      %912 = vmatprep.mubr.bf16.mxu0 %v355
      %913 = vmatmul.mubr.bf16.gmra.mrb[0].mxu0 %v354
      %v914 = vpop.f32.mrb[0].mxu0
      %v915 = vadd.f32 %v875, %v914
      %v916 = vpop.f32.mrb[0].mxu0
      %v917 = vpop.f32.mrb[0].mxu0
      %v918 = vpop.f32.mrb[0].mxu0
      %919 = vdwg.mxu0
      %920 = vmatprep.subr.bf16.mxu0 0
      %921 = vmatpush1.bf16.msra.mxu0 %v704
      %922 = vmatprep.subr.bf16.mxu0 0
      %923 = vmatpush1.bf16.msra.mxu0 %v705
      %924 = vmatprep.subr.bf16.mxu0 0
      %925 = vmatpush1.bf16.msra.mxu0 %v706
      %926 = vmatprep.subr.bf16.mxu0 0
      %927 = vmatpush1.bf16.msra.mxu0 %v707
      %928 = vmatprep.subr.bf16.mxu0 0
      %929 = vmatpush1.bf16.msra.mxu0 %v708
      %930 = vmatprep.subr.bf16.mxu0 0
      %931 = vmatpush1.bf16.msra.mxu0 %v709
      %932 = vmatprep.subr.bf16.mxu0 0
      %933 = vmatpush1.bf16.msra.mxu0 %v710
      %934 = vmatprep.subr.bf16.mxu0 0
      %935 = vmatpush1.bf16.msra.mxu0 %v711
      %936 = vmatprep.subr.bf16.mxu0 0
      %937 = vmatpush1.bf16.msra.mxu0 %v712
      %938 = vmatprep.subr.bf16.mxu0 0
      %939 = vmatpush1.bf16.msra.mxu0 %v713
      %940 = vmatprep.subr.bf16.mxu0 0
      %941 = vmatpush1.bf16.msra.mxu0 %v714
      %942 = vmatprep.subr.bf16.mxu0 0
      %943 = vmatpush1.bf16.msra.mxu0 %v715
      %944 = vmatprep.subr.bf16.mxu0 0
      %945 = vmatpush1.bf16.msra.mxu0 %v716
      %946 = vmatprep.subr.bf16.mxu0 0
      %947 = vmatpush1.bf16.msra.mxu0 %v717
      %948 = vmatprep.subr.bf16.mxu0 0
      %949 = vmatpush1.bf16.msra.mxu0 %v718
      %950 = vmatprep.subr.bf16.mxu0 0
      %951 = vmatpush1.bf16.msra.mxu0 %v719
      %952 = vmatprep.mubr.bf16.mxu0 %v357
      %953 = vmatmul.mubr.bf16.gmra.mrb[0].mxu0 %v356
      %v954 = vpop.f32.mrb[0].mxu0
      %v955 = vadd.f32 %v915, %v954
      %v956 = vpop.f32.mrb[0].mxu0
      %v957 = vpop.f32.mrb[0].mxu0
      %v958 = vpop.f32.mrb[0].mxu0
      %959 = vdwg.mxu0
      %960 = vmatprep.subr.bf16.mxu0 0
      %961 = vmatpush1.bf16.msra.mxu0 %v720
      %962 = vmatprep.subr.bf16.mxu0 0
      %963 = vmatpush1.bf16.msra.mxu0 %v721
      %964 = vmatprep.subr.bf16.mxu0 0
      %965 = vmatpush1.bf16.msra.mxu0 %v722
      %966 = vmatprep.subr.bf16.mxu0 0
      %967 = vmatpush1.bf16.msra.mxu0 %v723
      %968 = vmatprep.subr.bf16.mxu0 0
      %969 = vmatpush1.bf16.msra.mxu0 %v724
      %970 = vmatprep.subr.bf16.mxu0 0
      %971 = vmatpush1.bf16.msra.mxu0 %v725
      %972 = vmatprep.subr.bf16.mxu0 0
      %973 = vmatpush1.bf16.msra.mxu0 %v726
      %974 = vmatprep.subr.bf16.mxu0 0
      %975 = vmatpush1.bf16.msra.mxu0 %v727
      %976 = vmatprep.subr.bf16.mxu0 0
      %977 = vmatpush1.bf16.msra.mxu0 0
      %978 = vmatprep.subr.bf16.mxu0 0
      %979 = vmatpush1.bf16.msra.mxu0 0
      %980 = vmatprep.subr.bf16.mxu0 0
      %981 = vmatpush1.bf16.msra.mxu0 0
      %982 = vmatprep.subr.bf16.mxu0 0
      %983 = vmatpush1.bf16.msra.mxu0 0
      %984 = vmatprep.subr.bf16.mxu0 0
      %985 = vmatpush1.bf16.msra.mxu0 0
      %986 = vmatprep.subr.bf16.mxu0 0
      %987 = vmatpush1.bf16.msra.mxu0 0
      %988 = vmatprep.subr.bf16.mxu0 0
      %989 = vmatpush1.bf16.msra.mxu0 0
      %990 = vmatprep.subr.bf16.mxu0 0
      %991 = vmatpush1.bf16.msra.mxu0 0
      %992 = vmatprep.mubr.bf16.mxu0 0
      %993 = vmatmul.mubr.bf16.gmra.mrb[0].mxu0 %v358
      %v994 = vpop.f32.mrb[0].mxu0
      %v995 = vadd.f32 %v955, %v994
      %v996 = vpop.f32.mrb[0].mxu0
      %v997 = vpop.f32.mrb[0].mxu0
      %v998 = vpop.f32.mrb[0].mxu0
      %999 = vdwg.mxu0
      %v1000 = vld [vmem:[%s181] sm:$0xf]
      %v1001 = vunpack.c.l.bf16 %v1000
      %v1002 = vmul.f32 %v995, %v1001
      %v1003 = vpack.c.bf16 %v1002, %v1002
      %1004 = vst [vmem:[%s185] sm:$0xf] %v1003
      %p1005 = scmp.lt.s32.totalorder %s14, 1
      %s1006 = scalar_select %p1005, %s14, 1
      %s1007 = smul.addr %s1006, 4
      %s1008 = scalar_lea.vmem %s3, %s1007
      // Predicated region
      $region33: #{partial_conv.1} parent=31 // pred_check
        %p1009 = pneg %p105
      $region34: #{partial_conv.1} parent=31 // pred_check_branch
        %1011 = sbr.rel (%p1009) target = $region36
      $region35: #{partial_conv.1} parent=31 // pred_region
        _
      $region36: #{partial_conv.1} parent=31 // pred_fallthru
        _
    $region32: #{partial_conv.1} parent=5 // pred_fallthru
      _
    %p1012 = scmp.le.s32.totalorder 2, %s9
    // Predicated region
    $region37: #{partial_conv.1} parent=5 // pred_check
      %p1013 = pneg %p1012
    $region38: #{partial_conv.1} parent=5 // pred_check_branch
      %1015 = sbr.rel (%p1013) target = $region40
    $region39: #{partial_conv.1} parent=5 // pred_region
      %s1016 = ssub.s32 %s9, 2
      // Predicated region
      $region41: #{partial_conv.1} parent=39 // pred_check
        %p1017 = pneg %p111
      $region42: #{partial_conv.1} parent=39 // pred_check_branch
        %1019 = sbr.rel (%p1017) target = $region44
      $region43: #{partial_conv.1} parent=39 // pred_region
        %p1020 = scmp.lt.s32.totalorder %s15, 1
        %s1021 = scalar_select %p1020, %s15, 1
        %s1022 = smul.addr %s1021, 4
        %s1023 = scalar_lea.vmem %s3, %s1022
      $region44: #{partial_conv.1} parent=39 // pred_fallthru
        _
    $region40: #{partial_conv.1} parent=5 // pred_fallthru
      _
  $region6: #{partial_conv.1} parent=0 // loop_footer
    %s13 = sadd.s32 1, %s9
  $region7: #{partial_conv.1} parent=0 // loop_footer_branch
    %8 = sbr.rel target = $region3
  $region8: #{partial_conv.1} parent=0 // loop_exit
    _

</llo_original>
